<compile_context>
chip_gen: v7x
topology: tpu7x:2x2x1
jax: 0.10.0
libtpu: 0.0.40
codegen_flags: <defaults>
</compile_context>

<pallas_src>
import math

import jax
import jax.numpy as jnp
from jax import lax
from jax.experimental import pallas as pl
from jax.experimental.pallas import tpu as pltpu

# softplus^{-1}(1): rho pad value -> padded sigma == 1 -> padded KL term == 0 exactly.
_RHO_PAD = math.log(math.e - 1.0)


def _round_up(x, m):
    return ((x + m - 1) // m) * m


def _softplus(x):
    # Numerically stable softplus written with exp/log only (Mosaic-friendly).
    return jnp.maximum(x, 0.0) + jnp.log(1.0 + jnp.exp(-jnp.abs(x)))


def _kl_std_normal(mu, sigma):
    # KL( N(mu, sigma) || N(0, 1) ), elementwise.
    return -jnp.log(sigma) + 0.5 * (sigma * sigma + mu * mu) - 0.5


def _bayes_linear_kernel(x_ref, wmu_ref, wrho_ref, ew_ref,
                         bmu_ref, brho_ref, eb_ref,
                         y_ref, kl_ref, acc_ref):
    k = pl.program_id(1)
    nk = pl.num_programs(1)

    # ---- sample this weight tile (once per (j, k) tile; batch is not tiled) -------
    w_mu = wmu_ref[...]                          # (tn, tk) f32
    w_sigma = _softplus(wrho_ref[...])           # f32 (VPU + EUP)
    w = w_mu + w_sigma * ew_ref[...]             # rsample

    # ---- matmul accumulated over the K axis (f32 end-to-end) ----------------------
    @pl.when(k == 0)
    def _():
        acc_ref[...] = jnp.zeros_like(acc_ref)

    # x:(B,tk) contracted with w:(tn,tk) on dim 1 of both -> (B,tn); no w transpose.
    acc_ref[...] += lax.dot_general(
        x_ref[...], w,
        dimension_numbers=(((1,), (1,)), ((), ())),
        preferred_element_type=jnp.float32)

    # ---- KL partial for this weight tile (no masking needed: see rho pad value) ---
    kl_tile = jnp.sum(_kl_std_normal(w_mu, w_sigma))

    @pl.when(k == 0)
    def _():
        # Bias KL counted exactly once per out-tile; initializes the k-resident block.
        b_sigma = _softplus(brho_ref[...])
        kl_b = jnp.sum(_kl_std_normal(bmu_ref[...], b_sigma))
        kl_ref[0, 0] = kl_tile + kl_b

    @pl.when(k != 0)
    def _():
        kl_ref[0, 0] += kl_tile

    # ---- finalize: add sampled bias, write lane-dense f32 output -------------------
    @pl.when(k == nk - 1)
    def _():
        b = bmu_ref[...] + _softplus(brho_ref[...]) * eb_ref[...]   # (1, tn)
        y_ref[...] = (acc_ref[...] + b).astype(y_ref.dtype)


@jax.jit
def bayesian_linear(x, weight_mu, weight_rho, bias_mu, bias_rho, eps_w, eps_b):
    """Returns (y, kl_divergence_scalar) for y = x @ (mu + softplus(rho)*eps_w).T + bias."""
    batch, in_features = x.shape
    out_features = weight_mu.shape[0]
    f32 = jnp.float32

    # Lane/sublane-friendly padded sizes.  (Design assumes small batch: x is a single
    # (b_p, tk) block re-streamed per out-tile.  Add a batch grid axis if batch grows.)
    b_p = _round_up(batch, 8)
    out_p = _round_up(out_features, 128)
    in_p = _round_up(in_features, 128)

    # Tiles: kernel is HBM-bound (3 f32 weight-sized streams), so make tiles large.
    # tn=512, tk=2048 -> 3 x 4 MiB weight tiles, double-buffered ~= 24 MiB, which fits
    # the default 32 MiB scoped VMEM limit on every generation (v7x has 64 MiB physical).
    tk = min(2048, in_p)
    in_p = _round_up(in_p, tk)
    tn = min(512, out_p)
    if out_p // tn < 2 and out_p > 128:
        # Keep >= 2 out-tiles when possible so the "parallel" j axis can shard across
        # v7x's two TensorCores (grow tk, not tn, when enlarging tiles).
        tn = out_p // 2 if (out_p // 2) % 128 == 0 else 128
    out_p = _round_up(out_p, tn)
    nj, nk = out_p // tn, in_p // tk

    def pad2(a, rows, cols, val=0.0):
        a = a.astype(f32)
        return jnp.pad(a, ((0, rows - a.shape[0]), (0, cols - a.shape[1])),
                       constant_values=val)

    xp = pad2(x, b_p, in_p)
    wmu = pad2(weight_mu, out_p, in_p)
    wrho = pad2(weight_rho, out_p, in_p, val=_RHO_PAD)   # padded sigma == 1 -> KL == 0
    ewp = pad2(eps_w, out_p, in_p)                       # padded eps == 0 -> padded w == 0
    bmu = pad2(bias_mu.reshape(1, -1), 1, out_p)
    brho = pad2(bias_rho.reshape(1, -1), 1, out_p, val=_RHO_PAD)
    ebp = pad2(eps_b.reshape(1, -1), 1, out_p)

    grid_spec = pltpu.PrefetchScalarGridSpec(
        num_scalar_prefetch=0,
        grid=(nj, nk),
        in_specs=[
            pl.BlockSpec((b_p, tk), lambda j, k: (0, k)),   # x
            pl.BlockSpec((tn, tk), lambda j, k: (j, k)),    # weight_mu
            pl.BlockSpec((tn, tk), lambda j, k: (j, k)),    # weight_rho
            pl.BlockSpec((tn, tk), lambda j, k: (j, k)),    # eps_w
            pl.BlockSpec((1, tn), lambda j, k: (0, j)),     # bias_mu
            pl.BlockSpec((1, tn), lambda j, k: (0, j)),     # bias_rho
            pl.BlockSpec((1, tn), lambda j, k: (0, j)),     # eps_b
        ],
        out_specs=[
            pl.BlockSpec((b_p, tn), lambda j, k: (0, j)),   # y (resident across k)
            pl.BlockSpec((1, 1), lambda j, k: (j, 0),
                         memory_space=pltpu.SMEM),          # per-out-tile KL (resident across k)
        ],
        scratch_shapes=[pltpu.VMEM((b_p, tn), jnp.float32)],
    )

    cost = pl.CostEstimate(
        flops=2 * b_p * out_p * in_p,
        transcendentals=3 * out_p * in_p,
        bytes_accessed=4 * (3 * out_p * in_p + nj * b_p * in_p
                            + b_p * out_p + 3 * out_p + nj),
    )

    y_p, kl_parts = pl.pallas_call(
        _bayes_linear_kernel,
        out_shape=(
            jax.ShapeDtypeStruct((b_p, out_p), jnp.float32),
            jax.ShapeDtypeStruct((nj, 1), jnp.float32),
        ),
        grid_spec=grid_spec,
        compiler_params=pltpu.CompilerParams(
            dimension_semantics=("parallel", "arbitrary")),
        cost_estimate=cost,
    )(xp, wmu, wrho, ewp, bmu, brho, ebp)

    return y_p[:batch, :out_features], jnp.sum(kl_parts)


def _reference(x, weight_mu, weight_rho, bias_mu, bias_rho, eps_w, eps_b):
    w_sigma = jnp.log1p(jnp.exp(weight_rho))
    w = weight_mu + w_sigma * eps_w
    b_sigma = jnp.log1p(jnp.exp(bias_rho))
    b = bias_mu + b_sigma * eps_b
    kl_w = -jnp.log(w_sigma) + 0.5 * (w_sigma ** 2 + weight_mu ** 2) - 0.5
    kl_b = -jnp.log(b_sigma) + 0.5 * (b_sigma ** 2 + bias_mu ** 2) - 0.5
    y = jnp.dot(x, w.T, precision=lax.Precision.HIGHEST) + b
    return y, jnp.sum(kl_w) + jnp.sum(kl_b), w, b


if __name__ == "__main__":
    key = jax.random.PRNGKey(0)
    k_x, k_wmu, k_wrho, k_brho, k_ew, k_eb = jax.random.split(key, 6)

    batch, in_features, out_features = 8, 32, 16

    # Deterministic parameter init mirroring the module's __init__ scales.
    x = jax.random.normal(k_x, (batch, in_features), dtype=jnp.float32)
    weight_mu = jax.random.normal(k_wmu, (out_features, in_features), jnp.float32) * 0.1
    weight_rho = jax.random.normal(k_wrho, (out_features, in_features), jnp.float32) * -3.0
    bias_mu = jnp.zeros((out_features,), jnp.float32)
    bias_rho = jax.random.normal(k_brho, (out_features,), jnp.float32) * -3.0

    # Reparameterization noise (the stochastic part of rsample), drawn outside the kernel.
    eps_w = jax.random.normal(k_ew, (out_features, in_features), jnp.float32)
    eps_b = jax.random.normal(k_eb, (out_features,), jnp.float32)

    y, kl = bayesian_linear(x, weight_mu, weight_rho, bias_mu, bias_rho, eps_w, eps_b)
    jax.block_until_ready(y)
    jax.block_until_ready(kl)

    y_ref, kl_ref, w_samp, b_samp = _reference(
        x, weight_mu, weight_rho, bias_mu, bias_rho, eps_w, eps_b)

    # Scale-aware output check: tolerance is bounded by the magnitude of the accumulated
    # |x|.|w| terms, so it stays meaningful yet robust to the TPU's f32 matmul precision.
    scale = jnp.dot(jnp.abs(x), jnp.abs(w_samp).T,
                    precision=lax.Precision.HIGHEST) + jnp.abs(b_samp)
    err = jnp.abs(y - y_ref)
    assert bool(jnp.all(err <= 1e-4 + 2e-2 * scale)), "output mismatch"

    # KL path is entirely f32 elementwise; padding contributes ~0 by construction.
    assert jnp.allclose(kl, kl_ref, rtol=1e-3, atol=1e-1), "kl mismatch"

    print("KERNEL_OK")
</pallas_src>

<mosaic_0001>
module attributes {stable_mosaic.version = 11 : i64} {
  func.func @_bayes_linear_kernel(%arg0: i32, %arg1: i32, %arg2: memref<8x128xf32, #tpu.memory_space<vmem>>, %arg3: memref<128x128xf32, #tpu.memory_space<vmem>>, %arg4: memref<128x128xf32, #tpu.memory_space<vmem>>, %arg5: memref<128x128xf32, #tpu.memory_space<vmem>>, %arg6: memref<1x128xf32, #tpu.memory_space<vmem>>, %arg7: memref<1x128xf32, #tpu.memory_space<vmem>>, %arg8: memref<1x128xf32, #tpu.memory_space<vmem>>, %arg9: memref<8x128xf32, #tpu.memory_space<vmem>>, %arg10: memref<1x1xf32, #tpu.memory_space<smem>>, %arg11: memref<8x128xf32, #tpu.memory_space<vmem>>) attributes {dimension_semantics = [#tpu.dimension_semantics<parallel>, #tpu.dimension_semantics<arbitrary>], iteration_bounds = array<i64: 1, 1>, scalar_prefetch = 0 : i64, scratch_operands = 1 : i64, tpu.core_type = #tpu.core_type<tc>, window_params = [{transform_indices = @transform_0, window_bounds = array<i64: 8, 128>}, {transform_indices = @transform_1, window_bounds = array<i64: 128, 128>}, {transform_indices = @transform_2, window_bounds = array<i64: 128, 128>}, {transform_indices = @transform_3, window_bounds = array<i64: 128, 128>}, {transform_indices = @transform_4, window_bounds = array<i64: 1, 128>}, {transform_indices = @transform_5, window_bounds = array<i64: 1, 128>}, {transform_indices = @transform_6, window_bounds = array<i64: 1, 128>}, {transform_indices = @transform_7, window_bounds = array<i64: 8, 128>}, {transform_indices = @transform_8, window_bounds = array<i64: 1, 1>}]} {
    %c0 = arith.constant 0 : index
    %c0_0 = arith.constant 0 : index
    %0 = vector.load %arg3[%c0, %c0_0] : memref<128x128xf32, #tpu.memory_space<vmem>>, vector<128x128xf32>
    %c0_1 = arith.constant 0 : index
    %c0_2 = arith.constant 0 : index
    %1 = vector.load %arg4[%c0_1, %c0_2] : memref<128x128xf32, #tpu.memory_space<vmem>>, vector<128x128xf32>
    %cst = arith.constant 0.000000e+00 : f32
    %2 = vector.broadcast %cst : f32 to vector<128x128xf32>
    %3 = arith.maximumf %1, %2 : vector<128x128xf32>
    %4 = math.absf %1 : vector<128x128xf32>
    %cst_3 = arith.constant 0.000000e+00 : f32
    %5 = vector.broadcast %cst_3 : f32 to vector<128x128xf32>
    %6 = arith.subf %5, %4 : vector<128x128xf32>
    %7 = math.exp %6 : vector<128x128xf32>
    %cst_4 = arith.constant 1.000000e+00 : f32
    %8 = vector.broadcast %cst_4 : f32 to vector<128x128xf32>
    %9 = arith.addf %8, %7 : vector<128x128xf32>
    %10 = math.log %9 : vector<128x128xf32>
    %11 = arith.addf %3, %10 : vector<128x128xf32>
    %c0_5 = arith.constant 0 : index
    %c0_6 = arith.constant 0 : index
    %12 = vector.load %arg5[%c0_5, %c0_6] : memref<128x128xf32, #tpu.memory_space<vmem>>, vector<128x128xf32>
    %13 = arith.mulf %11, %12 : vector<128x128xf32>
    %14 = arith.addf %0, %13 : vector<128x128xf32>
    %c0_i32 = arith.constant 0 : i32
    %15 = arith.cmpi eq, %arg1, %c0_i32 : i32
    %16 = arith.extui %15 : i1 to i32
    %c0_i32_7 = arith.constant 0 : i32
    %17 = arith.cmpi ne, %16, %c0_i32_7 : i32
    scf.if %17 {
      %cst_25 = arith.constant 0.000000e+00 : f32
      %47 = vector.broadcast %cst_25 : f32 to vector<8x128xf32>
      %c0_26 = arith.constant 0 : index
      %c0_27 = arith.constant 0 : index
      %48 = vector.load %arg11[%c0_26, %c0_27] : memref<8x128xf32, #tpu.memory_space<vmem>>, vector<8x128xf32>
      tpu.vector_store %arg11[%c0_26, %c0_27], %47 {strides = array<i32>} : memref<8x128xf32, #tpu.memory_space<vmem>>, vector<8x128xf32>,
    } else {
    }
    %c0_8 = arith.constant 0 : index
    %c0_9 = arith.constant 0 : index
    %18 = vector.load %arg11[%c0_8, %c0_9] : memref<8x128xf32, #tpu.memory_space<vmem>>, vector<8x128xf32>
    %c0_10 = arith.constant 0 : index
    %c0_11 = arith.constant 0 : index
    %19 = vector.load %arg2[%c0_10, %c0_11] : memref<8x128xf32, #tpu.memory_space<vmem>>, vector<8x128xf32>
    %cst_12 = arith.constant dense<0.000000e+00> : vector<8x128xf32>
    %20 = tpu.matmul %19, %14, %cst_12 {dimension_numbers = #tpu.dot_dimension_numbers<[1], [1], [0], [0], [0, 0, 1, 0], [], []>} : vector<8x128xf32>, vector<128x128xf32>, vector<8x128xf32> -> vector<8x128xf32>
    %21 = arith.addf %18, %20 : vector<8x128xf32>
    %c0_13 = arith.constant 0 : index
    %c0_14 = arith.constant 0 : index
    %22 = vector.load %arg11[%c0_13, %c0_14] : memref<8x128xf32, #tpu.memory_space<vmem>>, vector<8x128xf32>
    tpu.vector_store %arg11[%c0_13, %c0_14], %21 {strides = array<i32>} : memref<8x128xf32, #tpu.memory_space<vmem>>, vector<8x128xf32>,
    %23 = math.log %11 : vector<128x128xf32>
    %cst_15 = arith.constant 0.000000e+00 : f32
    %24 = vector.broadcast %cst_15 : f32 to vector<128x128xf32>
    %25 = arith.subf %24, %23 : vector<128x128xf32>
    %26 = arith.mulf %11, %11 : vector<128x128xf32>
    %27 = arith.mulf %0, %0 : vector<128x128xf32>
    %28 = arith.addf %26, %27 : vector<128x128xf32>
    %cst_16 = arith.constant 5.000000e-01 : f32
    %29 = vector.broadcast %cst_16 : f32 to vector<128x128xf32>
    %30 = arith.mulf %29, %28 : vector<128x128xf32>
    %31 = arith.addf %25, %30 : vector<128x128xf32>
    %cst_17 = arith.constant 5.000000e-01 : f32
    %32 = vector.broadcast %cst_17 : f32 to vector<128x128xf32>
    %33 = arith.subf %31, %32 : vector<128x128xf32>
    %34 = vector.shape_cast %33 : vector<128x128xf32> to vector<1x128x128xf32>
    %cst_18 = arith.constant dense<0.000000e+00> : vector<1xf32>
    %35 = vector.multi_reduction <add>, %34, %cst_18 [1, 2] : vector<1x128x128xf32> to vector<1xf32>
    %36 = vector.shape_cast %35 : vector<1xf32> to vector<1x1x1xf32>
    %37 = vector.extract %36[0, 0, 0] : f32 from vector<1x1x1xf32>
    %c0_i32_19 = arith.constant 0 : i32
    %38 = arith.cmpi eq, %arg1, %c0_i32_19 : i32
    %39 = arith.extui %38 : i1 to i32
    %c0_i32_20 = arith.constant 0 : i32
    %40 = arith.cmpi ne, %39, %c0_i32_20 : i32
    scf.if %40 {
      %c0_25 = arith.constant 0 : index
      %c0_26 = arith.constant 0 : index
      %47 = vector.load %arg7[%c0_25, %c0_26] : memref<1x128xf32, #tpu.memory_space<vmem>>, vector<1x128xf32>
      %cst_27 = arith.constant 0.000000e+00 : f32
      %48 = vector.broadcast %cst_27 : f32 to vector<1x128xf32>
      %49 = arith.maximumf %47, %48 : vector<1x128xf32>
      %50 = math.absf %47 : vector<1x128xf32>
      %cst_28 = arith.constant 0.000000e+00 : f32
      %51 = vector.broadcast %cst_28 : f32 to vector<1x128xf32>
      %52 = arith.subf %51, %50 : vector<1x128xf32>
      %53 = math.exp %52 : vector<1x128xf32>
      %cst_29 = arith.constant 1.000000e+00 : f32
      %54 = vector.broadcast %cst_29 : f32 to vector<1x128xf32>
      %55 = arith.addf %54, %53 : vector<1x128xf32>
      %56 = math.log %55 : vector<1x128xf32>
      %57 = arith.addf %49, %56 : vector<1x128xf32>
      %c0_30 = arith.constant 0 : index
      %c0_31 = arith.constant 0 : index
      %58 = vector.load %arg6[%c0_30, %c0_31] : memref<1x128xf32, #tpu.memory_space<vmem>>, vector<1x128xf32>
      %59 = math.log %57 : vector<1x128xf32>
      %cst_32 = arith.constant 0.000000e+00 : f32
      %60 = vector.broadcast %cst_32 : f32 to vector<1x128xf32>
      %61 = arith.subf %60, %59 : vector<1x128xf32>
      %62 = arith.mulf %57, %57 : vector<1x128xf32>
      %63 = arith.mulf %58, %58 : vector<1x128xf32>
      %64 = arith.addf %62, %63 : vector<1x128xf32>
      %cst_33 = arith.constant 5.000000e-01 : f32
      %65 = vector.broadcast %cst_33 : f32 to vector<1x128xf32>
      %66 = arith.mulf %65, %64 : vector<1x128xf32>
      %67 = arith.addf %61, %66 : vector<1x128xf32>
      %cst_34 = arith.constant 5.000000e-01 : f32
      %68 = vector.broadcast %cst_34 : f32 to vector<1x128xf32>
      %69 = arith.subf %67, %68 : vector<1x128xf32>
      %70 = vector.shape_cast %69 : vector<1x128xf32> to vector<1x1x128xf32>
      %cst_35 = arith.constant dense<0.000000e+00> : vector<1xf32>
      %71 = vector.multi_reduction <add>, %70, %cst_35 [1, 2] : vector<1x1x128xf32> to vector<1xf32>
      %72 = vector.shape_cast %71 : vector<1xf32> to vector<1x1x1xf32>
      %73 = vector.extract %72[0, 0, 0] : f32 from vector<1x1x1xf32>
      %74 = arith.addf %37, %73 : f32
      %c0_36 = arith.constant 0 : index
      %c0_37 = arith.constant 0 : index
      %75 = memref.load %arg10[%c0_36, %c0_37] : memref<1x1xf32, #tpu.memory_space<smem>>
      memref.store %74, %arg10[%c0_36, %c0_37] : memref<1x1xf32, #tpu.memory_space<smem>>
    } else {
    }
    %c0_i32_21 = arith.constant 0 : i32
    %41 = arith.cmpi ne, %arg1, %c0_i32_21 : i32
    %42 = arith.extui %41 : i1 to i32
    %c0_i32_22 = arith.constant 0 : i32
    %43 = arith.cmpi ne, %42, %c0_i32_22 : i32
    scf.if %43 {
      %c0_25 = arith.constant 0 : index
      %c0_26 = arith.constant 0 : index
      %47 = memref.load %arg10[%c0_25, %c0_26] : memref<1x1xf32, #tpu.memory_space<smem>>
      %48 = arith.addf %47, %37 : f32
      %c0_27 = arith.constant 0 : index
      %c0_28 = arith.constant 0 : index
      %49 = memref.load %arg10[%c0_27, %c0_28] : memref<1x1xf32, #tpu.memory_space<smem>>
      memref.store %48, %arg10[%c0_27, %c0_28] : memref<1x1xf32, #tpu.memory_space<smem>>
    } else {
    }
    %c0_i32_23 = arith.constant 0 : i32
    %44 = arith.cmpi eq, %arg1, %c0_i32_23 : i32
    %45 = arith.extui %44 : i1 to i32
    %c0_i32_24 = arith.constant 0 : i32
    %46 = arith.cmpi ne, %45, %c0_i32_24 : i32
    scf.if %46 {
      %c0_25 = arith.constant 0 : index
      %c0_26 = arith.constant 0 : index
      %47 = vector.load %arg6[%c0_25, %c0_26] : memref<1x128xf32, #tpu.memory_space<vmem>>, vector<1x128xf32>
      %c0_27 = arith.constant 0 : index
      %c0_28 = arith.constant 0 : index
      %48 = vector.load %arg7[%c0_27, %c0_28] : memref<1x128xf32, #tpu.memory_space<vmem>>, vector<1x128xf32>
      %cst_29 = arith.constant 0.000000e+00 : f32
      %49 = vector.broadcast %cst_29 : f32 to vector<1x128xf32>
      %50 = arith.maximumf %48, %49 : vector<1x128xf32>
      %51 = math.absf %48 : vector<1x128xf32>
      %cst_30 = arith.constant 0.000000e+00 : f32
      %52 = vector.broadcast %cst_30 : f32 to vector<1x128xf32>
      %53 = arith.subf %52, %51 : vector<1x128xf32>
      %54 = math.exp %53 : vector<1x128xf32>
      %cst_31 = arith.constant 1.000000e+00 : f32
      %55 = vector.broadcast %cst_31 : f32 to vector<1x128xf32>
      %56 = arith.addf %55, %54 : vector<1x128xf32>
      %57 = math.log %56 : vector<1x128xf32>
      %58 = arith.addf %50, %57 : vector<1x128xf32>
      %c0_32 = arith.constant 0 : index
      %c0_33 = arith.constant 0 : index
      %59 = vector.load %arg8[%c0_32, %c0_33] : memref<1x128xf32, #tpu.memory_space<vmem>>, vector<1x128xf32>
      %60 = arith.mulf %58, %59 : vector<1x128xf32>
      %61 = arith.addf %47, %60 : vector<1x128xf32>
      %c0_34 = arith.constant 0 : index
      %c0_35 = arith.constant 0 : index
      %62 = vector.load %arg11[%c0_34, %c0_35] : memref<8x128xf32, #tpu.memory_space<vmem>>, vector<8x128xf32>
      %63 = vector.broadcast %61 : vector<1x128xf32> to vector<8x128xf32>
      %64 = arith.addf %62, %63 : vector<8x128xf32>
      %c0_36 = arith.constant 0 : index
      %c0_37 = arith.constant 0 : index
      %65 = vector.load %arg9[%c0_36, %c0_37] : memref<8x128xf32, #tpu.memory_space<vmem>>, vector<8x128xf32>
      tpu.vector_store %arg9[%c0_36, %c0_37], %64 {strides = array<i32>} : memref<8x128xf32, #tpu.memory_space<vmem>>, vector<8x128xf32>,
    } else {
    }
    return
  }
  func.func @transform_0(%arg0: i32, %arg1: i32) -> (i32, i32) {
    %c0_i32 = arith.constant 0 : i32
    %c0_i32_0 = arith.constant 0 : i32
    return %c0_i32, %arg1 : i32, i32
  }
  func.func @transform_1(%arg0: i32, %arg1: i32) -> (i32, i32) {
    %c0_i32 = arith.constant 0 : i32
    return %arg0, %arg1 : i32, i32
  }
  func.func @transform_2(%arg0: i32, %arg1: i32) -> (i32, i32) {
    %c0_i32 = arith.constant 0 : i32
    return %arg0, %arg1 : i32, i32
  }
  func.func @transform_3(%arg0: i32, %arg1: i32) -> (i32, i32) {
    %c0_i32 = arith.constant 0 : i32
    return %arg0, %arg1 : i32, i32
  }
  func.func @transform_4(%arg0: i32, %arg1: i32) -> (i32, i32) {
    %c0_i32 = arith.constant 0 : i32
    %c0_i32_0 = arith.constant 0 : i32
    return %c0_i32, %arg0 : i32, i32
  }
  func.func @transform_5(%arg0: i32, %arg1: i32) -> (i32, i32) {
    %c0_i32 = arith.constant 0 : i32
    %c0_i32_0 = arith.constant 0 : i32
    return %c0_i32, %arg0 : i32, i32
  }
  func.func @transform_6(%arg0: i32, %arg1: i32) -> (i32, i32) {
    %c0_i32 = arith.constant 0 : i32
    %c0_i32_0 = arith.constant 0 : i32
    return %c0_i32, %arg0 : i32, i32
  }
  func.func @transform_7(%arg0: i32, %arg1: i32) -> (i32, i32) {
    %c0_i32 = arith.constant 0 : i32
    %c0_i32_0 = arith.constant 0 : i32
    return %c0_i32, %arg0 : i32, i32
  }
  func.func @transform_8(%arg0: i32, %arg1: i32) -> (i32, i32) {
    %c0_i32 = arith.constant 0 : i32
    %c0_i32_0 = arith.constant 0 : i32
    return %arg0, %c0_i32 : i32, i32
  }
}

</mosaic_0001>

<llo_original>
// kernel: bayesian_linear.1
$region0: #{bayesian_linear.1}
  #allocation0 [shape = 'u32[]', space=smem, size = 0x4, offset = 0x4, fixed_abs, tag = 'smem constant byte address 0x4 - core index']
  #allocation1 [shape = 'u32[144,128]{1,0:T(1,128)}', space=vmem, size = 0x12000, scoped, tag = 'internal scratch']
  #allocation2 [shape = 'f32[8,128]{1,0:T(8,128)}', space=vmem, size = 0x1000, scoped, tag = 'scratch operand']
  %s0 = inlined_call_operand.vmem [shape: f32[8,128], index: 0, kind: input, shape index: {}]
  %s1 = inlined_call_operand.vmem [shape: f32[128,128], index: 1, kind: input, shape index: {}]
  %s2 = inlined_call_operand.vmem [shape: f32[128,128], index: 2, kind: input, shape index: {}]
  %s3 = inlined_call_operand.vmem [shape: f32[128,128], index: 3, kind: input, shape index: {}]
  %s4 = inlined_call_operand.vmem [shape: f32[1,128], index: 4, kind: input, shape index: {}]
  %s5 = inlined_call_operand.vmem [shape: f32[1,128], index: 5, kind: input, shape index: {}]
  %s6 = inlined_call_operand.vmem [shape: f32[1,128], index: 6, kind: input, shape index: {}]
  %s7 = inlined_call_operand.hbm [shape: f32[8,128], index: 7, kind: output, shape index: {0}]
  %s8 = inlined_call_operand.hbm [shape: f32[1,1], index: 8, kind: output, shape index: {1}]
  %9 = xla_tuple %s7, %s8
  %s10 = sld [smem:[#allocation0]]
  $region62: #{bayesian_linear.1} parent=0
    _
  %s12 = ssub.s32 1, %s10
  %s13 = scalar_select 0, %s12, %s10
  $region1: #{bayesian_linear.1} parent=0
    #allocation3 [shape = 'u8[4096]{0}', space=vmem, size = 0x1000, scoped, tag = 'output window, operand 0, single buffered']
    #allocation4 [shape = 's32[1]{0}', space=sflag, size = 0x4, scoped, tag = 'scoped memory for bayesian_linear.1']
    #allocation5 [shape = 's32[1]{0}', space=sflag, size = 0x4, scoped, tag = 'scoped memory for bayesian_linear.1']
    #allocation6 [shape = 'u8[512]{0}', space=smem, size = 0x200, scoped, tag = 'output window, operand 1, single buffered']
    %14 = vsyncpa [#allocation4], 0
    %15 = vsyncpa [#allocation5], 0
    // Predicated region
    $region2: #{bayesian_linear.1} parent=1 // pred_check
      _
    $region3: #{bayesian_linear.1} parent=1 // pred_check_branch
      %17 = sbr.rel (0) target = $region5
    $region4: #{bayesian_linear.1} parent=1 // pred_region
      _
    $region5: #{bayesian_linear.1} parent=1 // pred_fallthru
      _
    // Predicated region
    $region6: #{bayesian_linear.1} parent=1 // pred_check
      _
    $region7: #{bayesian_linear.1} parent=1 // pred_check_branch
      %19 = sbr.rel (0) target = $region9
    $region8: #{bayesian_linear.1} parent=1 // pred_region
      _
    $region9: #{bayesian_linear.1} parent=1 // pred_fallthru
      _
    // Predicated region
    $region10: #{bayesian_linear.1} parent=1 // pred_check
      _
    $region11: #{bayesian_linear.1} parent=1 // pred_check_branch
      %21 = sbr.rel (0) target = $region13
    $region12: #{bayesian_linear.1} parent=1 // pred_region
      _
    $region13: #{bayesian_linear.1} parent=1 // pred_fallthru
      _
    // Predicated region
    $region14: #{bayesian_linear.1} parent=1 // pred_check
      _
    $region15: #{bayesian_linear.1} parent=1 // pred_check_branch
      %23 = sbr.rel (0) target = $region17
    $region16: #{bayesian_linear.1} parent=1 // pred_region
      _
    $region17: #{bayesian_linear.1} parent=1 // pred_fallthru
      _
    // Predicated region
    $region18: #{bayesian_linear.1} parent=1 // pred_check
      _
    $region19: #{bayesian_linear.1} parent=1 // pred_check_branch
      %25 = sbr.rel (0) target = $region21
    $region20: #{bayesian_linear.1} parent=1 // pred_region
      _
    $region21: #{bayesian_linear.1} parent=1 // pred_fallthru
      _
    // Predicated region
    $region22: #{bayesian_linear.1} parent=1 // pred_check
      _
    $region23: #{bayesian_linear.1} parent=1 // pred_check_branch
      %27 = sbr.rel (0) target = $region25
    $region24: #{bayesian_linear.1} parent=1 // pred_region
      _
    $region25: #{bayesian_linear.1} parent=1 // pred_fallthru
      _
    // Predicated region
    $region26: #{bayesian_linear.1} parent=1 // pred_check
      _
    $region27: #{bayesian_linear.1} parent=1 // pred_check_branch
      %29 = sbr.rel (0) target = $region29
    $region28: #{bayesian_linear.1} parent=1 // pred_region
      _
    $region29: #{bayesian_linear.1} parent=1 // pred_fallthru
      _
    %v30 = vld [vmem:[%s1] sm:$0xff]
    %v31 = vld [vmem:[%s1 + $0x8] sm:$0xff]
    %v32 = vld [vmem:[%s1 + $0x10] sm:$0xff]
    %v33 = vld [vmem:[%s1 + $0x18] sm:$0xff]
    %v34 = vld [vmem:[%s1 + $0x20] sm:$0xff]
    %v35 = vld [vmem:[%s1 + $0x28] sm:$0xff]
    %v36 = vld [vmem:[%s1 + $0x30] sm:$0xff]
    %v37 = vld [vmem:[%s1 + $0x38] sm:$0xff]
    %v38 = vld [vmem:[%s1 + $0x40] sm:$0xff]
    %v39 = vld [vmem:[%s1 + $0x48] sm:$0xff]
    %v40 = vld [vmem:[%s1 + $0x50] sm:$0xff]
    %v41 = vld [vmem:[%s1 + $0x58] sm:$0xff]
    %v42 = vld [vmem:[%s1 + $0x60] sm:$0xff]
    %v43 = vld [vmem:[%s1 + $0x68] sm:$0xff]
    %v44 = vld [vmem:[%s1 + $0x70] sm:$0xff]
    %v45 = vld [vmem:[%s1 + $0x78] sm:$0xff]
    %v46 = vld [vmem:[%s2] sm:$0xff]
    %v47 = vld [vmem:[%s2 + $0x8] sm:$0xff]
    %v48 = vld [vmem:[%s2 + $0x10] sm:$0xff]
    %v49 = vld [vmem:[%s2 + $0x18] sm:$0xff]
    %v50 = vld [vmem:[%s2 + $0x20] sm:$0xff]
    %v51 = vld [vmem:[%s2 + $0x28] sm:$0xff]
    %v52 = vld [vmem:[%s2 + $0x30] sm:$0xff]
    %v53 = vld [vmem:[%s2 + $0x38] sm:$0xff]
    %v54 = vld [vmem:[%s2 + $0x40] sm:$0xff]
    %v55 = vld [vmem:[%s2 + $0x48] sm:$0xff]
    %v56 = vld [vmem:[%s2 + $0x50] sm:$0xff]
    %v57 = vld [vmem:[%s2 + $0x58] sm:$0xff]
    %v58 = vld [vmem:[%s2 + $0x60] sm:$0xff]
    %v59 = vld [vmem:[%s2 + $0x68] sm:$0xff]
    %v60 = vld [vmem:[%s2 + $0x70] sm:$0xff]
    %v61 = vld [vmem:[%s2 + $0x78] sm:$0xff]
    %v62 = vmax.f32 %v46, 0.0
    %v63 = vmax.f32 %v47, 0.0
    %v64 = vmax.f32 %v48, 0.0
    %v65 = vmax.f32 %v49, 0.0
    %v66 = vmax.f32 %v50, 0.0
    %v67 = vmax.f32 %v51, 0.0
    %v68 = vmax.f32 %v52, 0.0
    %v69 = vmax.f32 %v53, 0.0
    %v70 = vmax.f32 %v54, 0.0
    %v71 = vmax.f32 %v55, 0.0
    %v72 = vmax.f32 %v56, 0.0
    %v73 = vmax.f32 %v57, 0.0
    %v74 = vmax.f32 %v58, 0.0
    %v75 = vmax.f32 %v59, 0.0
    %v76 = vmax.f32 %v60, 0.0
    %v77 = vmax.f32 %v61, 0.0
    %v78 = vand.u32 2147483647, %v46
    %v79 = vand.u32 2147483647, %v47
    %v80 = vand.u32 2147483647, %v48
    %v81 = vand.u32 2147483647, %v49
    %v82 = vand.u32 2147483647, %v50
    %v83 = vand.u32 2147483647, %v51
    %v84 = vand.u32 2147483647, %v52
    %v85 = vand.u32 2147483647, %v53
    %v86 = vand.u32 2147483647, %v54
    %v87 = vand.u32 2147483647, %v55
    %v88 = vand.u32 2147483647, %v56
    %v89 = vand.u32 2147483647, %v57
    %v90 = vand.u32 2147483647, %v58
    %v91 = vand.u32 2147483647, %v59
    %v92 = vand.u32 2147483647, %v60
    %v93 = vand.u32 2147483647, %v61
    %v94 = vsub.f32 0.0, %v78
    %v95 = vsub.f32 0.0, %v79
    %v96 = vsub.f32 0.0, %v80
    %v97 = vsub.f32 0.0, %v81
    %v98 = vsub.f32 0.0, %v82
    %v99 = vsub.f32 0.0, %v83
    %v100 = vsub.f32 0.0, %v84
    %v101 = vsub.f32 0.0, %v85
    %v102 = vsub.f32 0.0, %v86
    %v103 = vsub.f32 0.0, %v87
    %v104 = vsub.f32 0.0, %v88
    %v105 = vsub.f32 0.0, %v89
    %v106 = vsub.f32 0.0, %v90
    %v107 = vsub.f32 0.0, %v91
    %v108 = vsub.f32 0.0, %v92
    %v109 = vsub.f32 0.0, %v93
    %v110 = vmul.f32 %v94, 1.442695
    %v111 = vpow.pop %v110
    %v112 = vmul.f32 %v95, 1.442695
    %v113 = vpow.pop %v112
    %v114 = vmul.f32 %v96, 1.442695
    %v115 = vpow.pop %v114
    %v116 = vmul.f32 %v97, 1.442695
    %v117 = vpow.pop %v116
    %v118 = vmul.f32 %v98, 1.442695
    %v119 = vpow.pop %v118
    %v120 = vmul.f32 %v99, 1.442695
    %v121 = vpow.pop %v120
    %v122 = vmul.f32 %v100, 1.442695
    %v123 = vpow.pop %v122
    %v124 = vmul.f32 %v101, 1.442695
    %v125 = vpow.pop %v124
    %v126 = vmul.f32 %v102, 1.442695
    %v127 = vpow.pop %v126
    %v128 = vmul.f32 %v103, 1.442695
    %v129 = vpow.pop %v128
    %v130 = vmul.f32 %v104, 1.442695
    %v131 = vpow.pop %v130
    %v132 = vmul.f32 %v105, 1.442695
    %v133 = vpow.pop %v132
    %v134 = vmul.f32 %v106, 1.442695
    %v135 = vpow.pop %v134
    %v136 = vmul.f32 %v107, 1.442695
    %v137 = vpow.pop %v136
    %v138 = vmul.f32 %v108, 1.442695
    %v139 = vpow.pop %v138
    %v140 = vmul.f32 %v109, 1.442695
    %v141 = vpow.pop %v140
    %v142 = vadd.f32 %v111, 1.0
    %v143 = vadd.f32 %v113, 1.0
    %v144 = vadd.f32 %v115, 1.0
    %v145 = vadd.f32 %v117, 1.0
    %v146 = vadd.f32 %v119, 1.0
    %v147 = vadd.f32 %v121, 1.0
    %v148 = vadd.f32 %v123, 1.0
    %v149 = vadd.f32 %v125, 1.0
    %v150 = vadd.f32 %v127, 1.0
    %v151 = vadd.f32 %v129, 1.0
    %v152 = vadd.f32 %v131, 1.0
    %v153 = vadd.f32 %v133, 1.0
    %v154 = vadd.f32 %v135, 1.0
    %v155 = vadd.f32 %v137, 1.0
    %v156 = vadd.f32 %v139, 1.0
    %v157 = vadd.f32 %v141, 1.0
    %v158 = vlog2.pop %v142
    %v159 = vmul.f32 %v158, 0.6931472
    %v160 = vlog2.pop %v143
    %v161 = vmul.f32 %v160, 0.6931472
    %v162 = vlog2.pop %v144
    %v163 = vmul.f32 %v162, 0.6931472
    %v164 = vlog2.pop %v145
    %v165 = vmul.f32 %v164, 0.6931472
    %v166 = vlog2.pop %v146
    %v167 = vmul.f32 %v166, 0.6931472
    %v168 = vlog2.pop %v147
    %v169 = vmul.f32 %v168, 0.6931472
    %v170 = vlog2.pop %v148
    %v171 = vmul.f32 %v170, 0.6931472
    %v172 = vlog2.pop %v149
    %v173 = vmul.f32 %v172, 0.6931472
    %v174 = vlog2.pop %v150
    %v175 = vmul.f32 %v174, 0.6931472
    %v176 = vlog2.pop %v151
    %v177 = vmul.f32 %v176, 0.6931472
    %v178 = vlog2.pop %v152
    %v179 = vmul.f32 %v178, 0.6931472
    %v180 = vlog2.pop %v153
    %v181 = vmul.f32 %v180, 0.6931472
    %v182 = vlog2.pop %v154
    %v183 = vmul.f32 %v182, 0.6931472
    %v184 = vlog2.pop %v155
    %v185 = vmul.f32 %v184, 0.6931472
    %v186 = vlog2.pop %v156
    %v187 = vmul.f32 %v186, 0.6931472
    %v188 = vlog2.pop %v157
    %v189 = vmul.f32 %v188, 0.6931472
    %v190 = vadd.f32 %v62, %v159
    %v191 = vadd.f32 %v63, %v161
    %v192 = vadd.f32 %v64, %v163
    %v193 = vadd.f32 %v65, %v165
    %v194 = vadd.f32 %v66, %v167
    %v195 = vadd.f32 %v67, %v169
    %v196 = vadd.f32 %v68, %v171
    %v197 = vadd.f32 %v69, %v173
    %v198 = vadd.f32 %v70, %v175
    %v199 = vadd.f32 %v71, %v177
    %v200 = vadd.f32 %v72, %v179
    %v201 = vadd.f32 %v73, %v181
    %v202 = vadd.f32 %v74, %v183
    %v203 = vadd.f32 %v75, %v185
    %v204 = vadd.f32 %v76, %v187
    %v205 = vadd.f32 %v77, %v189
    %v206 = vld [vmem:[%s3] sm:$0xff]
    %v207 = vld [vmem:[%s3 + $0x8] sm:$0xff]
    %v208 = vld [vmem:[%s3 + $0x10] sm:$0xff]
    %v209 = vld [vmem:[%s3 + $0x18] sm:$0xff]
    %v210 = vld [vmem:[%s3 + $0x20] sm:$0xff]
    %v211 = vld [vmem:[%s3 + $0x28] sm:$0xff]
    %v212 = vld [vmem:[%s3 + $0x30] sm:$0xff]
    %v213 = vld [vmem:[%s3 + $0x38] sm:$0xff]
    %v214 = vld [vmem:[%s3 + $0x40] sm:$0xff]
    %v215 = vld [vmem:[%s3 + $0x48] sm:$0xff]
    %v216 = vld [vmem:[%s3 + $0x50] sm:$0xff]
    %v217 = vld [vmem:[%s3 + $0x58] sm:$0xff]
    %v218 = vld [vmem:[%s3 + $0x60] sm:$0xff]
    %v219 = vld [vmem:[%s3 + $0x68] sm:$0xff]
    %v220 = vld [vmem:[%s3 + $0x70] sm:$0xff]
    %v221 = vld [vmem:[%s3 + $0x78] sm:$0xff]
    %v222 = vmul.f32 %v190, %v206
    %v223 = vmul.f32 %v191, %v207
    %v224 = vmul.f32 %v192, %v208
    %v225 = vmul.f32 %v193, %v209
    %v226 = vmul.f32 %v194, %v210
    %v227 = vmul.f32 %v195, %v211
    %v228 = vmul.f32 %v196, %v212
    %v229 = vmul.f32 %v197, %v213
    %v230 = vmul.f32 %v198, %v214
    %v231 = vmul.f32 %v199, %v215
    %v232 = vmul.f32 %v200, %v216
    %v233 = vmul.f32 %v201, %v217
    %v234 = vmul.f32 %v202, %v218
    %v235 = vmul.f32 %v203, %v219
    %v236 = vmul.f32 %v204, %v220
    %v237 = vmul.f32 %v205, %v221
    %v238 = vadd.f32 %v30, %v222
    %v239 = vadd.f32 %v31, %v223
    %v240 = vadd.f32 %v32, %v224
    %v241 = vadd.f32 %v33, %v225
    %v242 = vadd.f32 %v34, %v226
    %v243 = vadd.f32 %v35, %v227
    %v244 = vadd.f32 %v36, %v228
    %v245 = vadd.f32 %v37, %v229
    %v246 = vadd.f32 %v38, %v230
    %v247 = vadd.f32 %v39, %v231
    %v248 = vadd.f32 %v40, %v232
    %v249 = vadd.f32 %v41, %v233
    %v250 = vadd.f32 %v42, %v234
    %v251 = vadd.f32 %v43, %v235
    %v252 = vadd.f32 %v44, %v236
    %v253 = vadd.f32 %v45, %v237
    %p254 = scmp.eq.s32.totalorder 0, 0
    // Predicated region
    $region30: #{bayesian_linear.1} parent=1 // pred_check
      %p255 = pneg %p254
    $region31: #{bayesian_linear.1} parent=1 // pred_check_branch
      %257 = sbr.rel (%p255) target = $region33
    $region32: #{bayesian_linear.1} parent=1 // pred_region
      %258 = vst [vmem:[#allocation2] sm:$0xff] 0.0
    $region33: #{bayesian_linear.1} parent=1 // pred_fallthru
      _
    %v259 = vld [vmem:[#allocation2] sm:$0xff]
    %v260 = vld [vmem:[%s0] sm:$0xff]
    %261 = vmatprep.subr.mxu0 0.0
    %262 = vmatpush1.xpose.msra.mxu0 %v238
    %263 = vmatprep.subr.mxu0 0.0
    %264 = vmatpush1.xpose.msra.mxu0 %v239
    %265 = vmatprep.subr.mxu0 0.0
    %266 = vmatpush1.xpose.msra.mxu0 %v240
    %267 = vmatprep.subr.mxu0 0.0
    %268 = vmatpush1.xpose.msra.mxu0 %v241
    %269 = vmatprep.subr.mxu0 0.0
    %270 = vmatpush1.xpose.msra.mxu0 %v242
    %271 = vmatprep.subr.mxu0 0.0
    %272 = vmatpush1.xpose.msra.mxu0 %v243
    %273 = vmatprep.subr.mxu0 0.0
    %274 = vmatpush1.xpose.msra.mxu0 %v244
    %275 = vmatprep.subr.mxu0 0.0
    %276 = vmatpush1.xpose.msra.mxu0 %v245
    %277 = vmatprep.subr.mxu0 0.0
    %278 = vmatpush1.xpose.msra.mxu0 %v246
    %279 = vmatprep.subr.mxu0 0.0
    %280 = vmatpush1.xpose.msra.mxu0 %v247
    %281 = vmatprep.subr.mxu0 0.0
    %282 = vmatpush1.xpose.msra.mxu0 %v248
    %283 = vmatprep.subr.mxu0 0.0
    %284 = vmatpush1.xpose.msra.mxu0 %v249
    %285 = vmatprep.subr.mxu0 0.0
    %286 = vmatpush1.xpose.msra.mxu0 %v250
    %287 = vmatprep.subr.mxu0 0.0
    %288 = vmatpush1.xpose.msra.mxu0 %v251
    %289 = vmatprep.subr.mxu0 0.0
    %290 = vmatpush1.xpose.msra.mxu0 %v252
    %291 = vmatprep.subr.mxu0 0.0
    %292 = vmatpush1.xpose.msra.mxu0 %v253
    %293 = vmatprep.subr.mxu0 0.0
    %294 = vmatpush1.xpose.msra.mxu0 0.0
    %295 = vmatprep.subr.mxu0 0.0
    %296 = vmatpush1.xpose.msra.mxu0 0.0
    %297 = vmatprep.subr.mxu0 0.0
    %298 = vmatpush1.xpose.msra.mxu0 0.0
    %299 = vmatprep.subr.mxu0 0.0
    %300 = vmatpush1.xpose.msra.mxu0 0.0
    %301 = vmatprep.subr.mxu0 0.0
    %302 = vmatpush1.xpose.msra.mxu0 0.0
    %303 = vmatprep.subr.mxu0 0.0
    %304 = vmatpush1.xpose.msra.mxu0 0.0
    %305 = vmatprep.subr.mxu0 0.0
    %306 = vmatpush1.xpose.msra.mxu0 0.0
    %307 = vmatprep.subr.mxu0 0.0
    %308 = vmatpush1.xpose.msra.mxu0 0.0
    %309 = vmatprep.subr.mxu0 0.0
    %310 = vmatpush1.xpose.msra.mxu0 0.0
    %311 = vmatprep.subr.mxu0 0.0
    %312 = vmatpush1.xpose.msra.mxu0 0.0
    %313 = vmatprep.subr.mxu0 0.0
    %314 = vmatpush1.xpose.msra.mxu0 0.0
    %315 = vmatprep.subr.mxu0 0.0
    %316 = vmatpush1.xpose.msra.mxu0 0.0
    %317 = vmatprep.subr.mxu0 0.0
    %318 = vmatpush1.xpose.msra.mxu0 0.0
    %319 = vmatprep.subr.mxu0 0.0
    %320 = vmatpush1.xpose.msra.mxu0 0.0
    %321 = vmatprep.subr.mxu0 0.0
    %322 = vmatpush1.xpose.msra.mxu0 0.0
    %323 = vmatprep.subr.mxu0 0.0
    %324 = vmatpush1.xpose.msra.mxu0 0.0
    %325 = vmatprep.mubr.f32.mxu0 0.0
    %326 = vmatmul.mubr.f32.gmra.mrb[0].mxu0 %v260
    %v327 = vpop.f32.mrb[0].mxu0
    %v328 = vadd.f32 0.0, %v327
    %v329 = vpop.f32.mrb[0].mxu0
    %330 = vdwg.mxu0
    %v331 = vadd.f32 %v259, %v328
    %332 = vst [vmem:[#allocation2] sm:$0xff] %v331
    %v333 = vlog2.pop %v190
    %v334 = vmul.f32 %v333, 0.6931472
    %v335 = vlog2.pop %v191
    %v336 = vmul.f32 %v335, 0.6931472
    %v337 = vlog2.pop %v192
    %v338 = vmul.f32 %v337, 0.6931472
    %v339 = vlog2.pop %v193
    %v340 = vmul.f32 %v339, 0.6931472
    %v341 = vlog2.pop %v194
    %v342 = vmul.f32 %v341, 0.6931472
    %v343 = vlog2.pop %v195
    %v344 = vmul.f32 %v343, 0.6931472
    %v345 = vlog2.pop %v196
    %v346 = vmul.f32 %v345, 0.6931472
    %v347 = vlog2.pop %v197
    %v348 = vmul.f32 %v347, 0.6931472
    %v349 = vlog2.pop %v198
    %v350 = vmul.f32 %v349, 0.6931472
    %v351 = vlog2.pop %v199
    %v352 = vmul.f32 %v351, 0.6931472
    %v353 = vlog2.pop %v200
    %v354 = vmul.f32 %v353, 0.6931472
    %v355 = vlog2.pop %v201
    %v356 = vmul.f32 %v355, 0.6931472
    %v357 = vlog2.pop %v202
    %v358 = vmul.f32 %v357, 0.6931472
    %v359 = vlog2.pop %v203
    %v360 = vmul.f32 %v359, 0.6931472
    %v361 = vlog2.pop %v204
    %v362 = vmul.f32 %v361, 0.6931472
    %v363 = vlog2.pop %v205
    %v364 = vmul.f32 %v363, 0.6931472
    %v365 = vsub.f32 0.0, %v334
    %v366 = vsub.f32 0.0, %v336
    %v367 = vsub.f32 0.0, %v338
    %v368 = vsub.f32 0.0, %v340
    %v369 = vsub.f32 0.0, %v342
    %v370 = vsub.f32 0.0, %v344
    %v371 = vsub.f32 0.0, %v346
    %v372 = vsub.f32 0.0, %v348
    %v373 = vsub.f32 0.0, %v350
    %v374 = vsub.f32 0.0, %v352
    %v375 = vsub.f32 0.0, %v354
    %v376 = vsub.f32 0.0, %v356
    %v377 = vsub.f32 0.0, %v358
    %v378 = vsub.f32 0.0, %v360
    %v379 = vsub.f32 0.0, %v362
    %v380 = vsub.f32 0.0, %v364
    %v381 = vmul.f32 %v190, %v190
    %v382 = vmul.f32 %v191, %v191
    %v383 = vmul.f32 %v192, %v192
    %v384 = vmul.f32 %v193, %v193
    %v385 = vmul.f32 %v194, %v194
    %v386 = vmul.f32 %v195, %v195
    %v387 = vmul.f32 %v196, %v196
    %v388 = vmul.f32 %v197, %v197
    %v389 = vmul.f32 %v198, %v198
    %v390 = vmul.f32 %v199, %v199
    %v391 = vmul.f32 %v200, %v200
    %v392 = vmul.f32 %v201, %v201
    %v393 = vmul.f32 %v202, %v202
    %v394 = vmul.f32 %v203, %v203
    %v395 = vmul.f32 %v204, %v204
    %v396 = vmul.f32 %v205, %v205
    %v397 = vmul.f32 %v30, %v30
    %v398 = vmul.f32 %v31, %v31
    %v399 = vmul.f32 %v32, %v32
    %v400 = vmul.f32 %v33, %v33
    %v401 = vmul.f32 %v34, %v34
    %v402 = vmul.f32 %v35, %v35
    %v403 = vmul.f32 %v36, %v36
    %v404 = vmul.f32 %v37, %v37
    %v405 = vmul.f32 %v38, %v38
    %v406 = vmul.f32 %v39, %v39
    %v407 = vmul.f32 %v40, %v40
    %v408 = vmul.f32 %v41, %v41
    %v409 = vmul.f32 %v42, %v42
    %v410 = vmul.f32 %v43, %v43
    %v411 = vmul.f32 %v44, %v44
    %v412 = vmul.f32 %v45, %v45
    %v413 = vadd.f32 %v381, %v397
    %v414 = vadd.f32 %v382, %v398
    %v415 = vadd.f32 %v383, %v399
    %v416 = vadd.f32 %v384, %v400
    %v417 = vadd.f32 %v385, %v401
    %v418 = vadd.f32 %v386, %v402
    %v419 = vadd.f32 %v387, %v403
    %v420 = vadd.f32 %v388, %v404
    %v421 = vadd.f32 %v389, %v405
    %v422 = vadd.f32 %v390, %v406
    %v423 = vadd.f32 %v391, %v407
    %v424 = vadd.f32 %v392, %v408
    %v425 = vadd.f32 %v393, %v409
    %v426 = vadd.f32 %v394, %v410
    %v427 = vadd.f32 %v395, %v411
    %v428 = vadd.f32 %v396, %v412
    %v429 = vmul.f32 %v413, 0.5
    %v430 = vmul.f32 %v414, 0.5
    %v431 = vmul.f32 %v415, 0.5
    %v432 = vmul.f32 %v416, 0.5
    %v433 = vmul.f32 %v417, 0.5
    %v434 = vmul.f32 %v418, 0.5
    %v435 = vmul.f32 %v419, 0.5
    %v436 = vmul.f32 %v420, 0.5
    %v437 = vmul.f32 %v421, 0.5
    %v438 = vmul.f32 %v422, 0.5
    %v439 = vmul.f32 %v423, 0.5
    %v440 = vmul.f32 %v424, 0.5
    %v441 = vmul.f32 %v425, 0.5
    %v442 = vmul.f32 %v426, 0.5
    %v443 = vmul.f32 %v427, 0.5
    %v444 = vmul.f32 %v428, 0.5
    %v445 = vadd.f32 %v365, %v429
    %v446 = vadd.f32 %v366, %v430
    %v447 = vadd.f32 %v367, %v431
    %v448 = vadd.f32 %v368, %v432
    %v449 = vadd.f32 %v369, %v433
    %v450 = vadd.f32 %v370, %v434
    %v451 = vadd.f32 %v371, %v435
    %v452 = vadd.f32 %v372, %v436
    %v453 = vadd.f32 %v373, %v437
    %v454 = vadd.f32 %v374, %v438
    %v455 = vadd.f32 %v375, %v439
    %v456 = vadd.f32 %v376, %v440
    %v457 = vadd.f32 %v377, %v441
    %v458 = vadd.f32 %v378, %v442
    %v459 = vadd.f32 %v379, %v443
    %v460 = vadd.f32 %v380, %v444
    %v461 = vsub.f32 %v445, 0.5
    %v462 = vsub.f32 %v446, 0.5
    %v463 = vsub.f32 %v447, 0.5
    %v464 = vsub.f32 %v448, 0.5
    %v465 = vsub.f32 %v449, 0.5
    %v466 = vsub.f32 %v450, 0.5
    %v467 = vsub.f32 %v451, 0.5
    %v468 = vsub.f32 %v452, 0.5
    %v469 = vsub.f32 %v453, 0.5
    %v470 = vsub.f32 %v454, 0.5
    %v471 = vsub.f32 %v455, 0.5
    %v472 = vsub.f32 %v456, 0.5
    %v473 = vsub.f32 %v457, 0.5
    %v474 = vsub.f32 %v458, 0.5
    %v475 = vsub.f32 %v459, 0.5
    %v476 = vsub.f32 %v460, 0.5
    %v477 = vadd.f32 %v461, %v462
    %v478 = vadd.f32 %v477, %v463
    %v479 = vadd.f32 %v478, %v464
    %v480 = vadd.f32 %v479, %v465
    %v481 = vadd.f32 %v480, %v466
    %v482 = vadd.f32 %v481, %v467
    %v483 = vadd.f32 %v482, %v468
    %v484 = vadd.f32 %v483, %v469
    %v485 = vadd.f32 %v484, %v470
    %v486 = vadd.f32 %v485, %v471
    %v487 = vadd.f32 %v486, %v472
    %v488 = vadd.f32 %v487, %v473
    %v489 = vadd.f32 %v488, %v474
    %v490 = vadd.f32 %v489, %v475
    %v491 = vadd.f32 %v490, %v476
    %492 = vadd.xlane.f32.xlu0 %v491
    %v493 = vpop.xlane.xlu0 %492
    %v494 = vrot.slane %v493, 4
    %v495 = vadd.f32 %v493, %v494
    %v496 = vrot.slane %v495, 2
    %v497 = vadd.f32 %v495, %v496
    %v498 = vrot.slane %v497, 1
    %v499 = vadd.f32 %v497, %v498
    %s500 = vtos %v499
    // Predicated region
    $region34: #{bayesian_linear.1} parent=1 // pred_check
      %p501 = pneg %p254
    $region35: #{bayesian_linear.1} parent=1 // pred_check_branch
      %503 = sbr.rel (%p501) target = $region37
    $region36: #{bayesian_linear.1} parent=1 // pred_region
      %v504 = vld [vmem:[%s5] sm:$0x1]
      %v505 = vmax.f32 %v504, 0.0
      %v506 = vand.u32 2147483647, %v504
      %v507 = vsub.f32 0.0, %v506
      %v508 = vmul.f32 %v507, 1.442695
      %v509 = vpow.pop %v508
      %v510 = vadd.f32 %v509, 1.0
      %v511 = vlog2.pop %v510
      %v512 = vmul.f32 %v511, 0.6931472
      %v513 = vadd.f32 %v505, %v512
      %v514 = vld [vmem:[%s4] sm:$0x1]
      %v515 = vlog2.pop %v513
      %v516 = vmul.f32 %v515, 0.6931472
      %v517 = vsub.f32 0.0, %v516
      %v518 = vmul.f32 %v513, %v513
      %v519 = vmul.f32 %v514, %v514
      %v520 = vadd.f32 %v518, %v519
      %v521 = vmul.f32 %v520, 0.5
      %v522 = vadd.f32 %v517, %v521
      %v523 = vsub.f32 %v522, 0.5
      %vm524 = vcmask 1040384
      %v525 = vsel %vm524, %v523, 0.0
      %526 = vadd.xlane.f32.xlu0 %v525
      %v527 = vpop.xlane.xlu0 %526
      %v528 = vrot.slane %v527, 4
      %v529 = vadd.f32 %v527, %v528
      %v530 = vrot.slane %v529, 2
      %v531 = vadd.f32 %v529, %v530
      %v532 = vrot.slane %v531, 1
      %v533 = vadd.f32 %v531, %v532
      %s534 = vtos %v533
      %s535 = sadd.f32 %s500, %s534
      %s536 = scalar_lea.smem [#allocation6], 0
      %537 = sst [smem:[%s536]] %s535
    $region37: #{bayesian_linear.1} parent=1 // pred_fallthru
      _
    %p538 = scmp.ne.s32.totalorder 0, 0
    // Predicated region
    $region38: #{bayesian_linear.1} parent=1 // pred_check
      %p539 = pneg %p538
    $region39: #{bayesian_linear.1} parent=1 // pred_check_branch
      %541 = sbr.rel (%p539) target = $region41
    $region40: #{bayesian_linear.1} parent=1 // pred_region
      %s542 = sld [smem:[#allocation6]]
      %s543 = sadd.f32 %s542, %s500
      %s544 = scalar_lea.smem [#allocation6], 0
      %545 = sst [smem:[%s544]] %s543
    $region41: #{bayesian_linear.1} parent=1 // pred_fallthru
      _
    // Predicated region
    $region42: #{bayesian_linear.1} parent=1 // pred_check
      %p546 = pneg %p254
    $region43: #{bayesian_linear.1} parent=1 // pred_check_branch
      %548 = sbr.rel (%p546) target = $region45
    $region44: #{bayesian_linear.1} parent=1 // pred_region
      %v549 = vld [vmem:[%s4] sm:$0x1]
      %v550 = vld [vmem:[%s5] sm:$0x1]
      %v551 = vmax.f32 %v550, 0.0
      %v552 = vand.u32 2147483647, %v550
      %v553 = vsub.f32 0.0, %v552
      %v554 = vmul.f32 %v553, 1.442695
      %v555 = vpow.pop %v554
      %v556 = vadd.f32 %v555, 1.0
      %v557 = vlog2.pop %v556
      %v558 = vmul.f32 %v557, 0.6931472
      %v559 = vadd.f32 %v551, %v558
      %v560 = vld [vmem:[%s6] sm:$0x1]
      %v561 = vmul.f32 %v559, %v560
      %v562 = vadd.f32 %v549, %v561
      %v563 = vld [vmem:[#allocation2] sm:$0xff]
      %v565 = vlaneseq
      %v566 = vshrl.u32 %v565, 7
      %v567 = vsub.s32 0, %v566
      %v568 = vrot.slane %v562, %v567
      %v570 = vadd.f32 %v563, %v568
      %571 = vst [vmem:[#allocation3] sm:$0xff] %v570
    $region45: #{bayesian_linear.1} parent=1 // pred_fallthru
      _
    // Predicated region
    $region46: #{bayesian_linear.1} parent=1 // pred_check
      _
    $region47: #{bayesian_linear.1} parent=1 // pred_check_branch
      %573 = sbr.rel (0) target = $region49
    $region48: #{bayesian_linear.1} parent=1 // pred_region
      %s575 = ssub.s32 128, 128
      %576 = vsyncadd [#allocation4], %s575
      %s578 = sshll.u32 [#allocation3], 4
      %s579 = int_to_ptr.vmem [resolvable:$true] %s578
      %581 = dma.vmem_to_hbm [thread:$0]  %s579, 128, %s7, [#allocation4]
    $region49: #{bayesian_linear.1} parent=1 // pred_fallthru
      _
    // Predicated region
    $region50: #{bayesian_linear.1} parent=1 // pred_check
      _
    $region51: #{bayesian_linear.1} parent=1 // pred_check_branch
      %583 = sbr.rel (0) target = $region53
    $region52: #{bayesian_linear.1} parent=1 // pred_region
      %s585 = ssub.s32 16, 16
      %586 = vsyncadd [#allocation5], %s585
      %589 = dma.smem_to_hbm [#allocation6], 16, %s8, [#allocation5]
    $region53: #{bayesian_linear.1} parent=1 // pred_fallthru
      _
    // Predicated region
    $region54: #{bayesian_linear.1} parent=1 // pred_check
      _
    $region55: #{bayesian_linear.1} parent=1 // pred_check_branch
      %591 = sbr.rel (0) target = $region57
    $region56: #{bayesian_linear.1} parent=1 // pred_region
      %592 = dma.done [#allocation4], 128
    $region57: #{bayesian_linear.1} parent=1 // pred_fallthru
      _
    // Predicated region
    $region58: #{bayesian_linear.1} parent=1 // pred_check
      _
    $region59: #{bayesian_linear.1} parent=1 // pred_check_branch
      %594 = sbr.rel (0) target = $region61
    $region60: #{bayesian_linear.1} parent=1 // pred_region
      %595 = dma.done [#allocation5], 16
    $region61: #{bayesian_linear.1} parent=1 // pred_fallthru
      _
    %596 = sfence
    %597 = vsyncpa [#allocation4], 1
    %598 = vsyncpa [#allocation5], 1

</llo_original>
